<compile_context>
chip_gen: v7x
topology: tpu7x:2x2x1
jax: 0.10.0
libtpu: 0.0.40
codegen_flags: <defaults>
</compile_context>

<pallas_src>
import jax
import jax.numpy as jnp
from jax.experimental import pallas as pl
from jax.experimental.pallas import tpu as pltpu

H1 = 256          # per-branch layer-1 width
H2 = 100          # per-branch layer-2 width
YOUT = 2          # year branch output width
HID_PAD = 640     # 2*H1 (=512) + 128-lane pad block; year layer-1 output at lanes 512:514
OUT_PAD = 256     # 2 x 128 lanes: text 0:100, affiliation 100:200, year 200:202 (contiguous)
OUT_REAL = 2 * H2 + YOUT   # 202 real output columns


def fc_fused_kernel(x_ref, w1_ref, b1_ref, w2_ref, b2_ref, out_ref):
    # Layer 1: all three branches in one block-diagonal bf16 MXU dot, f32 accumulate.
    h = jnp.dot(x_ref[...], w1_ref[...], preferred_element_type=jnp.float32)
    h = jnp.maximum(h + b1_ref[...], 0.0)                      # bias + relu in f32
    # Layer 2: text/aff second linears + year identity pass-through; bf16 operands,
    # f32 accumulate, single lane-dense 256-wide unmasked store.
    z = jnp.dot(h.astype(jnp.bfloat16), w2_ref[...], preferred_element_type=jnp.float32)
    out_ref[...] = jnp.maximum(z + b2_ref[...], 0.0)


def build_fused_params(params, text_dim, affiliation_dim, year_dim):
    """Pack per-layer weights into two block-diagonal, lane-aligned matrices.

    W1/W2 are returned in bf16 (MXU-native); biases stay f32 (added in f32 in-kernel).
    """
    (wt1, bt1, wt2, bt2, wa1, ba1, wa2, ba2, wy, by) = params
    D = text_dim + affiliation_dim + year_dim

    w1 = jnp.zeros((D, HID_PAD), jnp.float32)
    w1 = w1.at[:text_dim, 0:H1].set(wt1)
    w1 = w1.at[text_dim:text_dim + affiliation_dim, H1:2 * H1].set(wa1)
    w1 = w1.at[D - year_dim:, 2 * H1:2 * H1 + YOUT].set(wy)

    b1 = jnp.zeros((1, HID_PAD), jnp.float32)
    b1 = b1.at[:, 0:H1].set(bt1)
    b1 = b1.at[:, H1:2 * H1].set(ba1)
    b1 = b1.at[:, 2 * H1:2 * H1 + YOUT].set(by)

    w2 = jnp.zeros((HID_PAD, OUT_PAD), jnp.float32)
    w2 = w2.at[0:H1, 0:H2].set(wt2)                                  # text   -> lanes 0:100
    w2 = w2.at[H1:2 * H1, H2:2 * H2].set(wa2)                        # affil  -> lanes 100:200
    # year (already bias+relu after layer 1) passes through an identity block
    w2 = w2.at[2 * H1:2 * H1 + YOUT, 2 * H2:2 * H2 + YOUT].set(
        jnp.eye(YOUT, dtype=jnp.float32))                            # year   -> lanes 200:202

    b2 = jnp.zeros((1, OUT_PAD), jnp.float32)
    b2 = b2.at[:, 0:H2].set(bt2)
    b2 = b2.at[:, H2:2 * H2].set(ba2)
    # padding / year lanes stay exactly zero (year bias applied in layer 1).
    return w1.astype(jnp.bfloat16), b1, w2.astype(jnp.bfloat16), b2


def _round_up8(x):
    return ((x + 7) // 8) * 8


def fc_model_forward(data, params, *, text_dim, affiliation_dim, year_dim, block_b=2048):
    """data: [B, text_dim + affiliation_dim + year_dim] -> [B, 202] f32."""
    B, D = data.shape
    assert D == text_dim + affiliation_dim + year_dim

    w1, b1, w2, b2 = build_fused_params(params, text_dim, affiliation_dim, year_dim)

    # bf16 activation stream (halves per-row input DMA bytes; dots accumulate in f32).
    data_bf = data.astype(jnp.bfloat16)

    # Batch tile: multiple of 8 sublanes, big enough to amortize per-step overhead,
    # but capped so the batch grid keeps >=2 steps for multi-TC (v7x) sharding.
    # No wrapper-side padding: Pallas masks the ragged last block on write-back and
    # each output row depends only on its own input row.
    tb = min(block_b, _round_up8(pl.cdiv(B, 2)), _round_up8(B))
    tb = max(8, tb)
    grid = (pl.cdiv(B, tb),)

    # VMEM budget: input/output double-buffers + resident fused weights + f32 h tile.
    vmem_est = (2 * tb * D * 2                      # input double-buffer (bf16)
                + 2 * tb * OUT_PAD * 4              # output double-buffer (f32)
                + D * HID_PAD * 2                   # resident W1 (bf16)
                + HID_PAD * OUT_PAD * 2             # resident W2 (bf16)
                + (HID_PAD + OUT_PAD) * 4           # biases (f32)
                + tb * HID_PAD * 4)                 # intermediate h (f32)
    vmem_limit = None
    if vmem_est > (24 << 20):                       # only raise above the default if needed
        vmem_limit = min(int(vmem_est * 2), 100 << 20)

    out = pl.pallas_call(
        fc_fused_kernel,
        out_shape=jax.ShapeDtypeStruct((B, OUT_PAD), jnp.float32),
        grid_spec=pltpu.PrefetchScalarGridSpec(
            num_scalar_prefetch=0,
            grid=grid,
            in_specs=[
                pl.BlockSpec((tb, D), lambda i: (i, 0)),             # data: streamed per tile
                pl.BlockSpec((D, HID_PAD), lambda i: (0, 0)),        # fused W1: resident
                pl.BlockSpec((1, HID_PAD), lambda i: (0, 0)),        # fused b1: resident
                pl.BlockSpec((HID_PAD, OUT_PAD), lambda i: (0, 0)),  # fused W2: resident
                pl.BlockSpec((1, OUT_PAD), lambda i: (0, 0)),        # fused b2: resident
            ],
            out_specs=pl.BlockSpec((tb, OUT_PAD), lambda i: (i, 0)),
        ),
        compiler_params=pltpu.CompilerParams(
            dimension_semantics=("parallel",),
            vmem_limit_bytes=vmem_limit),
    )(data_bf, w1, b1, w2, b2)

    # Real columns are packed contiguously (text | affiliation | year): one cheap slice,
    # no 3-way concat.  Downstream consumers may also use the 256-lane padded layout as-is.
    return out[:, :OUT_REAL]


def init_params(key, text_dim, affiliation_dim, year_dim):
    """Deterministic synthetic weights; stored as [in, out], biases as [1, out]."""
    ks = jax.random.split(key, 10)

    def lin(kw, kb, fan_in, fan_out):
        bound = 1.0 / jnp.sqrt(fan_in)
        w = jax.random.uniform(kw, (fan_in, fan_out), jnp.float32, -bound, bound)
        b = jax.random.uniform(kb, (1, fan_out), jnp.float32, -bound, bound)
        return w, b

    wt1, bt1 = lin(ks[0], ks[1], text_dim, H1)
    wt2, bt2 = lin(ks[2], ks[3], H1, H2)
    wa1, ba1 = lin(ks[4], ks[5], affiliation_dim, H1)
    wa2, ba2 = lin(ks[6], ks[7], H1, H2)
    wy, by = lin(ks[8], ks[9], year_dim, YOUT)
    return (wt1, bt1, wt2, bt2, wa1, ba1, wa2, ba2, wy, by)


def fc_model_ref(data, params, *, text_dim, affiliation_dim, year_dim):
    """Pure-JAX f32 reference mirroring the PyTorch forward (unfused)."""
    (wt1, bt1, wt2, bt2, wa1, ba1, wa2, ba2, wy, by) = params
    text = data[:, :text_dim]
    affiliation = data[:, text_dim:text_dim + affiliation_dim]
    year = data[:, -year_dim:]
    with jax.default_matmul_precision("highest"):
        t = jnp.maximum(text @ wt1 + bt1, 0.0)
        t = jnp.maximum(t @ wt2 + bt2, 0.0)
        a = jnp.maximum(affiliation @ wa1 + ba1, 0.0)
        a = jnp.maximum(a @ wa2 + ba2, 0.0)
        y = jnp.maximum(year @ wy + by, 0.0)
    return jnp.concatenate([t, a, y], axis=1)


if __name__ == "__main__":
    text_dim, affiliation_dim, year_dim = 32, 16, 8
    batch = 10   # non-multiple of the 8-row tile: exercises the masked ragged last block

    key = jax.random.PRNGKey(0)
    k_data, k_params = jax.random.split(key)

    data = jax.random.normal(
        k_data, (batch, text_dim + affiliation_dim + year_dim), dtype=jnp.float32)
    params = init_params(k_params, text_dim, affiliation_dim, year_dim)

    out = fc_model_forward(data, params,
                           text_dim=text_dim,
                           affiliation_dim=affiliation_dim,
                           year_dim=year_dim)
    out = jax.block_until_ready(out)

    ref = fc_model_ref(data, params,
                       text_dim=text_dim,
                       affiliation_dim=affiliation_dim,
                       year_dim=year_dim)

    assert out.shape == (batch, OUT_REAL), out.shape
    # Kernel uses bf16 operands with f32 accumulation; reference is full f32 ("highest"),
    # so the tolerance accounts for bf16 operand truncation.
    assert jnp.allclose(out, ref, atol=5e-2, rtol=5e-2), "mismatch vs reference"
    print("KERNEL_OK")
</pallas_src>

<mosaic_0001>
module attributes {stable_mosaic.version = 11 : i64} {
  func.func @fc_fused_kernel(%arg0: i32, %arg1: memref<8x56xbf16, #tpu.memory_space<vmem>>, %arg2: memref<56x640xbf16, #tpu.memory_space<vmem>>, %arg3: memref<1x640xf32, #tpu.memory_space<vmem>>, %arg4: memref<640x256xbf16, #tpu.memory_space<vmem>>, %arg5: memref<1x256xf32, #tpu.memory_space<vmem>>, %arg6: memref<8x256xf32, #tpu.memory_space<vmem>>) attributes {dimension_semantics = [#tpu.dimension_semantics<parallel>], iteration_bounds = array<i64: 2>, scalar_prefetch = 0 : i64, scratch_operands = 0 : i64, tpu.core_type = #tpu.core_type<tc>, window_params = [{transform_indices = @transform_0, window_bounds = array<i64: 8, 56>}, {pipeline_mode = #tpu.pipeline_mode<synchronous>, transform_indices = @transform_1, window_bounds = array<i64: 56, 640>}, {pipeline_mode = #tpu.pipeline_mode<synchronous>, transform_indices = @transform_2, window_bounds = array<i64: 1, 640>}, {pipeline_mode = #tpu.pipeline_mode<synchronous>, transform_indices = @transform_3, window_bounds = array<i64: 640, 256>}, {pipeline_mode = #tpu.pipeline_mode<synchronous>, transform_indices = @transform_4, window_bounds = array<i64: 1, 256>}, {transform_indices = @transform_5, window_bounds = array<i64: 8, 256>}]} {
    %c0 = arith.constant 0 : index
    %c0_0 = arith.constant 0 : index
    %0 = vector.load %arg1[%c0, %c0_0] : memref<8x56xbf16, #tpu.memory_space<vmem>>, vector<8x56xbf16>
    %c0_1 = arith.constant 0 : index
    %c0_2 = arith.constant 0 : index
    %1 = vector.load %arg2[%c0_1, %c0_2] : memref<56x640xbf16, #tpu.memory_space<vmem>>, vector<56x640xbf16>
    %cst = arith.constant dense<0.000000e+00> : vector<8x640xf32>
    %2 = tpu.matmul %0, %1, %cst {dimension_numbers = #tpu.dot_dimension_numbers<[1], [0], [0], [1], [0, 0, 1, 1], [], []>} : vector<8x56xbf16>, vector<56x640xbf16>, vector<8x640xf32> -> vector<8x640xf32>
    %c0_3 = arith.constant 0 : index
    %c0_4 = arith.constant 0 : index
    %3 = vector.load %arg3[%c0_3, %c0_4] : memref<1x640xf32, #tpu.memory_space<vmem>>, vector<1x640xf32>
    %4 = vector.broadcast %3 : vector<1x640xf32> to vector<8x640xf32>
    %5 = arith.addf %2, %4 : vector<8x640xf32>
    %cst_5 = arith.constant 0.000000e+00 : f32
    %6 = vector.broadcast %cst_5 : f32 to vector<8x640xf32>
    %7 = arith.maximumf %5, %6 : vector<8x640xf32>
    %8 = arith.truncf %7 : vector<8x640xf32> to vector<8x640xbf16>
    %c0_6 = arith.constant 0 : index
    %c0_7 = arith.constant 0 : index
    %9 = vector.load %arg4[%c0_6, %c0_7] : memref<640x256xbf16, #tpu.memory_space<vmem>>, vector<640x256xbf16>
    %cst_8 = arith.constant dense<0.000000e+00> : vector<8x256xf32>
    %10 = tpu.matmul %8, %9, %cst_8 {dimension_numbers = #tpu.dot_dimension_numbers<[1], [0], [0], [1], [0, 0, 1, 1], [], []>} : vector<8x640xbf16>, vector<640x256xbf16>, vector<8x256xf32> -> vector<8x256xf32>
    %c0_9 = arith.constant 0 : index
    %c0_10 = arith.constant 0 : index
    %11 = vector.load %arg5[%c0_9, %c0_10] : memref<1x256xf32, #tpu.memory_space<vmem>>, vector<1x256xf32>
    %12 = vector.broadcast %11 : vector<1x256xf32> to vector<8x256xf32>
    %13 = arith.addf %10, %12 : vector<8x256xf32>
    %cst_11 = arith.constant 0.000000e+00 : f32
    %14 = vector.broadcast %cst_11 : f32 to vector<8x256xf32>
    %15 = arith.maximumf %13, %14 : vector<8x256xf32>
    %c0_12 = arith.constant 0 : index
    %c0_13 = arith.constant 0 : index
    %16 = vector.load %arg6[%c0_12, %c0_13] : memref<8x256xf32, #tpu.memory_space<vmem>>, vector<8x256xf32>
    tpu.vector_store %arg6[%c0_12, %c0_13], %15 {strides = array<i32>} : memref<8x256xf32, #tpu.memory_space<vmem>>, vector<8x256xf32>,
    return
  }
  func.func @transform_0(%arg0: i32) -> (i32, i32) {
    %c0_i32 = arith.constant 0 : i32
    %c0_i32_0 = arith.constant 0 : i32
    return %arg0, %c0_i32 : i32, i32
  }
  func.func @transform_1(%arg0: i32) -> (i32, i32) {
    %c0_i32 = arith.constant 0 : i32
    %c0_i32_0 = arith.constant 0 : i32
    %c0_i32_1 = arith.constant 0 : i32
    return %c0_i32, %c0_i32_0 : i32, i32
  }
  func.func @transform_2(%arg0: i32) -> (i32, i32) {
    %c0_i32 = arith.constant 0 : i32
    %c0_i32_0 = arith.constant 0 : i32
    %c0_i32_1 = arith.constant 0 : i32
    return %c0_i32, %c0_i32_0 : i32, i32
  }
  func.func @transform_3(%arg0: i32) -> (i32, i32) {
    %c0_i32 = arith.constant 0 : i32
    %c0_i32_0 = arith.constant 0 : i32
    %c0_i32_1 = arith.constant 0 : i32
    return %c0_i32, %c0_i32_0 : i32, i32
  }
  func.func @transform_4(%arg0: i32) -> (i32, i32) {
    %c0_i32 = arith.constant 0 : i32
    %c0_i32_0 = arith.constant 0 : i32
    %c0_i32_1 = arith.constant 0 : i32
    return %c0_i32, %c0_i32_0 : i32, i32
  }
  func.func @transform_5(%arg0: i32) -> (i32, i32) {
    %c0_i32 = arith.constant 0 : i32
    %c0_i32_0 = arith.constant 0 : i32
    return %arg0, %c0_i32 : i32, i32
  }
}

</mosaic_0001>

<llo_original>
// kernel: tpu_custom_call.1
$region0: #{tpu_custom_call.1}
  #allocation0 [shape = 'u32[]', space=smem, size = 0x4, offset = 0x4, fixed_abs, tag = 'smem constant byte address 0x4 - core index']
  #allocation1 [shape = 'u32[144,128]{1,0:T(1,128)}', space=vmem, size = 0x12000, scoped, tag = 'internal scratch']
  %s0 = inlined_call_operand.hbm [shape: bf16[10,56], index: 0, kind: input, shape index: {}]
  %s1 = inlined_call_operand.hbm [shape: bf16[56,640], index: 1, kind: input, shape index: {}]
  %s2 = inlined_call_operand.vmem [shape: f32[1,640], index: 2, kind: input, shape index: {}]
  %s3 = inlined_call_operand.hbm [shape: bf16[640,256], index: 3, kind: input, shape index: {}]
  %s4 = inlined_call_operand.vmem [shape: f32[1,256], index: 4, kind: input, shape index: {}]
  %s5 = inlined_call_operand.hbm [shape: f32[10,256], index: 5, kind: output, shape index: {}]
  %s6 = sld [smem:[#allocation0]]
  $region65: #{tpu_custom_call.1} parent=0
    _
  %s8 = ssub.s32 1, %s6
  %s9 = scalar_select 0, %s8, %s6
  $region1: #{tpu_custom_call.1} parent=0
    #allocation2 [shape = 'u8[4096]{0}', space=vmem, size = 0x1000, scoped, tag = 'input window, operand 0']
    #allocation3 [shape = 's32[2]{0}', space=sflag, size = 0x8, scoped, tag = 'scoped memory for tpu_custom_call.1']
    #allocation4 [shape = 's32[2]{0}', space=sflag, size = 0x8, scoped, tag = 'scoped memory for tpu_custom_call.1']
    #allocation5 [shape = 'u8[71680]{0}', space=vmem, size = 0x11800, scoped, tag = 'input window, operand 1, single buffered']
    #allocation6 [shape = 's32[1]{0}', space=sflag, size = 0x4, scoped, tag = 'scoped memory for tpu_custom_call.1']
    #allocation7 [shape = 'u8[327680]{0}', space=vmem, size = 0x50000, scoped, tag = 'input window, operand 3, single buffered']
    #allocation8 [shape = 'u8[16384]{0}', space=vmem, size = 0x4000, scoped, tag = 'output window, operand 0']
    %10 = vsyncpa [#allocation3], 0
    %s11 = scalar_lea.sflag [#allocation3], 1
    %12 = vsyncpa %s11, 0
    %13 = vsyncpa [#allocation6], 0
    %14 = vsyncpa [#allocation4], 0
    %s15 = scalar_lea.sflag [#allocation4], 1
    %16 = vsyncpa %s15, 0
    loop: start=0, step=1, limit=4
    $region2: #{tpu_custom_call.1} parent=1 // loop_pre_header
      _
    $region3: #{tpu_custom_call.1} parent=1 // loop_header
      %s18 = sphi 0, %s22
      %p19 = scmp.ge.s32.totalorder %s18, 4
      %s28 = sphi 0, %s30
      %s31 = sphi 0, %s28
      %s32 = sphi 0, %s31
      %s48 = sphi 0, %s32
      %s52 = sphi 0, %s52
      %s54 = sphi 0, %s52
      %s55 = sphi 0, %s54
      %s69 = sphi 0, %s55
      %s73 = sphi 0, %s73
      %s75 = sphi 0, %s73
      %s76 = sphi 0, %s75
      %s90 = sphi 0, %s76
      %s94 = sphi 0, %s94
      %s96 = sphi 0, %s94
      %s97 = sphi 0, %s96
      %s111 = sphi 0, %s97
      %s115 = sphi 0, %s115
      %s117 = sphi 0, %s115
      %s118 = sphi 0, %s117
      %s132 = sphi 0, %s118
      %s138 = sphi 0, %s140
      %s141 = sphi 0, %s138
      %s142 = sphi 0, %s141
      %s158 = sphi 0, %s142
    $region4: #{tpu_custom_call.1} parent=1 // loop_header_branch
      %21 = sbr.rel (%p19) target = $region8
    $region5: #{tpu_custom_call.1} parent=1 // loop_body
      %s23 = ssub.s32 %s18, 1
      %s24 = ssub.s32 %s18, 2
      %s25 = sadd.s32 %s18, 1
      %s26 = ssub.s32 %s18, %s25
      %p27 = scmp.eq.s32.totalorder %s26, 0
      %s29 = sadd.s32 %s28, 1
      %s30 = scalar_select %p27, %s28, %s29
      %p33 = pneg %p27
      %p34 = scmp.eq.s32.totalorder %s18, 1
      %p35 = por %p33, %p34
      %p36 = scmp.ne.s32.totalorder %s28, %s31
      %p37 = scmp.eq.s32.totalorder %s18, 0
      %p38 = por %p36, %p37
      %p39 = scmp.ne.s32.totalorder %s28, %s31
      %p40 = scmp.eq.s32.totalorder %s23, 1
      %p41 = por %p39, %p40
      %p42 = scmp.ne.s32.totalorder %s31, %s32
      %p43 = scmp.eq.s32.totalorder %s23, 0
      %p44 = por %p42, %p43
      %p45 = scmp.ne.s32.totalorder %s31, %s32
      %p46 = scmp.eq.s32.totalorder %s24, 1
      %p47 = por %p45, %p46
      %p49 = scmp.ne.s32.totalorder %s32, %s48
      %p50 = scmp.eq.s32.totalorder %s24, 0
      %p51 = por %p49, %p50
      %s53 = sadd.s32 %s52, 1
      %p56 = scmp.eq.s32.totalorder %s18, 1
      %p57 = scmp.ne.s32.totalorder %s52, %s54
      %p58 = scmp.eq.s32.totalorder %s18, 0
      %p59 = por %p57, %p58
      %p60 = scmp.ne.s32.totalorder %s52, %s54
      %p61 = scmp.eq.s32.totalorder %s23, 1
      %p62 = por %p60, %p61
      %p63 = scmp.ne.s32.totalorder %s54, %s55
      %p64 = scmp.eq.s32.totalorder %s23, 0
      %p65 = por %p63, %p64
      %p66 = scmp.ne.s32.totalorder %s54, %s55
      %p67 = scmp.eq.s32.totalorder %s24, 1
      %p68 = por %p66, %p67
      %p70 = scmp.ne.s32.totalorder %s55, %s69
      %p71 = scmp.eq.s32.totalorder %s24, 0
      %p72 = por %p70, %p71
      %s74 = sadd.s32 %s73, 1
      %p77 = scmp.eq.s32.totalorder %s18, 1
      %p78 = scmp.ne.s32.totalorder %s73, %s75
      %p79 = scmp.eq.s32.totalorder %s18, 0
      %p80 = por %p78, %p79
      %p81 = scmp.ne.s32.totalorder %s73, %s75
      %p82 = scmp.eq.s32.totalorder %s23, 1
      %p83 = por %p81, %p82
      %p84 = scmp.ne.s32.totalorder %s75, %s76
      %p85 = scmp.eq.s32.totalorder %s23, 0
      %p86 = por %p84, %p85
      %p87 = scmp.ne.s32.totalorder %s75, %s76
      %p88 = scmp.eq.s32.totalorder %s24, 1
      %p89 = por %p87, %p88
      %p91 = scmp.ne.s32.totalorder %s76, %s90
      %p92 = scmp.eq.s32.totalorder %s24, 0
      %p93 = por %p91, %p92
      %s95 = sadd.s32 %s94, 1
      %p98 = scmp.eq.s32.totalorder %s18, 1
      %p99 = scmp.ne.s32.totalorder %s94, %s96
      %p100 = scmp.eq.s32.totalorder %s18, 0
      %p101 = por %p99, %p100
      %p102 = scmp.ne.s32.totalorder %s94, %s96
      %p103 = scmp.eq.s32.totalorder %s23, 1
      %p104 = por %p102, %p103
      %p105 = scmp.ne.s32.totalorder %s96, %s97
      %p106 = scmp.eq.s32.totalorder %s23, 0
      %p107 = por %p105, %p106
      %p108 = scmp.ne.s32.totalorder %s96, %s97
      %p109 = scmp.eq.s32.totalorder %s24, 1
      %p110 = por %p108, %p109
      %p112 = scmp.ne.s32.totalorder %s97, %s111
      %p113 = scmp.eq.s32.totalorder %s24, 0
      %p114 = por %p112, %p113
      %s116 = sadd.s32 %s115, 1
      %p119 = scmp.eq.s32.totalorder %s18, 1
      %p120 = scmp.ne.s32.totalorder %s115, %s117
      %p121 = scmp.eq.s32.totalorder %s18, 0
      %p122 = por %p120, %p121
      %p123 = scmp.ne.s32.totalorder %s115, %s117
      %p124 = scmp.eq.s32.totalorder %s23, 1
      %p125 = por %p123, %p124
      %p126 = scmp.ne.s32.totalorder %s117, %s118
      %p127 = scmp.eq.s32.totalorder %s23, 0
      %p128 = por %p126, %p127
      %p129 = scmp.ne.s32.totalorder %s117, %s118
      %p130 = scmp.eq.s32.totalorder %s24, 1
      %p131 = por %p129, %p130
      %p133 = scmp.ne.s32.totalorder %s118, %s132
      %p134 = scmp.eq.s32.totalorder %s24, 0
      %p135 = por %p133, %p134
      %s136 = ssub.s32 %s18, %s25
      %p137 = scmp.eq.s32.totalorder %s136, 0
      %s139 = sadd.s32 %s138, 1
      %s140 = scalar_select %p137, %s138, %s139
      %p143 = pneg %p137
      %p144 = scmp.eq.s32.totalorder %s18, 1
      %p145 = por %p143, %p144
      %p146 = scmp.ne.s32.totalorder %s138, %s141
      %p147 = scmp.eq.s32.totalorder %s18, 0
      %p148 = por %p146, %p147
      %p149 = scmp.ne.s32.totalorder %s138, %s141
      %p150 = scmp.eq.s32.totalorder %s23, 1
      %p151 = por %p149, %p150
      %p152 = scmp.ne.s32.totalorder %s141, %s142
      %p153 = scmp.eq.s32.totalorder %s23, 0
      %p154 = por %p152, %p153
      %p155 = scmp.ne.s32.totalorder %s141, %s142
      %p156 = scmp.eq.s32.totalorder %s24, 1
      %p157 = por %p155, %p156
      %p159 = scmp.ne.s32.totalorder %s142, %s158
      %p160 = scmp.eq.s32.totalorder %s24, 0
      %p161 = por %p159, %p160
      %p162 = scmp.le.s32.totalorder 1, %s18
      %p163 = scmp.lt.s32.totalorder %s18, 3
      %p164 = pnand %p162, %p163
      %p165 = pneg %p164
      // Predicated region
      $region9: #{tpu_custom_call.1} parent=5 // pred_check
        _
      $region10: #{tpu_custom_call.1} parent=5 // pred_check_branch
        %167 = sbr.rel (%p164) target = $region12
      $region11: #{tpu_custom_call.1} parent=5 // pred_region
        %s168 = ssub.s32 %s18, 1
        // Predicated region
        $region13: #{tpu_custom_call.1} parent=11 // pred_check
          %p169 = pneg %p65
        $region14: #{tpu_custom_call.1} parent=11 // pred_check_branch
          %171 = sbr.rel (%p169) target = $region16
        $region15: #{tpu_custom_call.1} parent=11 // pred_region
          %s173 = ssub.s32 2240, 2240
          %174 = vsyncadd [#allocation6], %s173
          %s175 = sshll.u32 [#allocation5], 4
          %s176 = int_to_ptr.vmem [resolvable:$true] %s175
          %181 = dma.hbm_to_vmem [thread:$0]  %s1, 2240, %s176, [#allocation6], 320, 320, 20
        $region16: #{tpu_custom_call.1} parent=11 // pred_fallthru
          _
        // Predicated region
        $region17: #{tpu_custom_call.1} parent=11 // pred_check
          %p182 = pneg %p86
        $region18: #{tpu_custom_call.1} parent=11 // pred_check_branch
          %184 = sbr.rel (%p182) target = $region20
        $region19: #{tpu_custom_call.1} parent=11 // pred_region
          _
        $region20: #{tpu_custom_call.1} parent=11 // pred_fallthru
          _
        // Predicated region
        $region21: #{tpu_custom_call.1} parent=11 // pred_check
          %p185 = pneg %p107
        $region22: #{tpu_custom_call.1} parent=11 // pred_check_branch
          %187 = sbr.rel (%p185) target = $region24
        $region23: #{tpu_custom_call.1} parent=11 // pred_region
          %s189 = ssub.s32 10240, 10240
          %190 = vsyncadd [#allocation6], %s189
          %s191 = sshll.u32 [#allocation7], 4
          %s192 = int_to_ptr.vmem [resolvable:$true] %s191
          %197 = dma.hbm_to_vmem [thread:$0]  %s3, 10240, %s192, [#allocation6], 128, 128, 8
        $region24: #{tpu_custom_call.1} parent=11 // pred_fallthru
          _
        // Predicated region
        $region25: #{tpu_custom_call.1} parent=11 // pred_check
          %p198 = pneg %p128
        $region26: #{tpu_custom_call.1} parent=11 // pred_check_branch
          %200 = sbr.rel (%p198) target = $region28
        $region27: #{tpu_custom_call.1} parent=11 // pred_region
          _
        $region28: #{tpu_custom_call.1} parent=11 // pred_fallthru
          _
      $region12: #{tpu_custom_call.1} parent=5 // pred_fallthru
        _
      %p201 = scmp.lt.s32.totalorder %s18, 2
      // Predicated region
      $region29: #{tpu_custom_call.1} parent=5 // pred_check
        %p202 = pneg %p201
      $region30: #{tpu_custom_call.1} parent=5 // pred_check_branch
        %204 = sbr.rel (%p202) target = $region32
      $region31: #{tpu_custom_call.1} parent=5 // pred_region
        // Predicated region
        $region33: #{tpu_custom_call.1} parent=31 // pred_check
          %p205 = pneg %p38
        $region34: #{tpu_custom_call.1} parent=31 // pred_check_branch
          %207 = sbr.rel (%p205) target = $region36
        $region35: #{tpu_custom_call.1} parent=31 // pred_region
          %s208 = sand.u32 %s28, 1
          %s209 = scalar_lea.sflag [#allocation3], %s208
          %s210 = sand.u32 %s28, 1
          %s211 = smul.addr %s210, 4
          %s212 = scalar_lea.vmem [#allocation2], %s211
          %s214 = ssub.s32 64, 64
          %215 = vsyncadd %s209, %s214
          %s216 = smul.addr %s18, 64
          %s217 = scalar_lea.hbm %s0, %s216
          %s219 = sshll.u32 %s212, 4
          %s220 = int_to_ptr.vmem [resolvable:$true] %s219
          %222 = dma.hbm_to_vmem [thread:$0]  %s217, 64, %s220, %s209
        $region36: #{tpu_custom_call.1} parent=31 // pred_fallthru
          _
      $region32: #{tpu_custom_call.1} parent=5 // pred_fallthru
        _
      %p223 = scmp.le.s32.totalorder 1, %s18
      %p224 = scmp.lt.s32.totalorder %s18, 3
      %p225 = pnand %p223, %p224
      %p226 = pneg %p225
      // Predicated region
      $region37: #{tpu_custom_call.1} parent=5 // pred_check
        _
      $region38: #{tpu_custom_call.1} parent=5 // pred_check_branch
        %228 = sbr.rel (%p225) target = $region40
      $region39: #{tpu_custom_call.1} parent=5 // pred_region
        %s229 = ssub.s32 %s18, 1
        %s230 = sand.u32 %s31, 1
        %s231 = scalar_lea.sflag [#allocation3], %s230
        %s232 = sand.u32 %s31, 1
        %s233 = smul.addr %s232, 4
        %s234 = scalar_lea.vmem [#allocation2], %s233
        // Predicated region
        $region41: #{tpu_custom_call.1} parent=39 // pred_check
          %p235 = pneg %p44
        $region42: #{tpu_custom_call.1} parent=39 // pred_check_branch
          %237 = sbr.rel (%p235) target = $region44
        $region43: #{tpu_custom_call.1} parent=39 // pred_region
          %238 = dma.done %s231, 64
        $region44: #{tpu_custom_call.1} parent=39 // pred_fallthru
          _
        // Predicated region
        $region45: #{tpu_custom_call.1} parent=39 // pred_check
          %p239 = pneg %p65
        $region46: #{tpu_custom_call.1} parent=39 // pred_check_branch
          %241 = sbr.rel (%p239) target = $region48
        $region47: #{tpu_custom_call.1} parent=39 // pred_region
          %242 = dma.done [#allocation6], 2240
        $region48: #{tpu_custom_call.1} parent=39 // pred_fallthru
          _
        // Predicated region
        $region49: #{tpu_custom_call.1} parent=39 // pred_check
          %p243 = pneg %p107
        $region50: #{tpu_custom_call.1} parent=39 // pred_check_branch
          %245 = sbr.rel (%p243) target = $region52
        $region51: #{tpu_custom_call.1} parent=39 // pred_region
          %246 = dma.done [#allocation6], 10240
        $region52: #{tpu_custom_call.1} parent=39 // pred_fallthru
          _
        %s247 = sand.u32 %s31, 1
        %s248 = scalar_lea.sflag [#allocation3], %s247
        %s249 = sand.u32 %s31, 1
        %s250 = smul.addr %s249, 4
        %s251 = scalar_lea.vmem [#allocation2], %s250
        %p252 = pneg %p44
        %p253 = pneg %p41
        %p254 = pneg %p65
        %p255 = pneg %p62
        %p256 = pneg %p86
        %p257 = pneg %p83
        %p258 = pneg %p107
        %p259 = pneg %p104
        %p260 = pneg %p128
        %p261 = pneg %p125
        %p262 = pneg %p154
        %p263 = pneg %p151
        %s264 = sand.u32 %s141, 1
        %s265 = scalar_lea.sflag [#allocation4], %s264
        %s266 = sand.u32 %s141, 1
        %s267 = smul.addr %s266, 16
        %s268 = scalar_lea.vmem [#allocation8], %s267
        %v270 = vld [vmem:[%s234] sm:$0xf]
        %v271 = vld [vmem:[#allocation5] sm:$0xff]
        %v272 = vld [vmem:[#allocation5 + $0x8] sm:$0xff]
        %v273 = vld [vmem:[#allocation5 + $0x10] sm:$0xf]
        %v274 = vld [vmem:[#allocation5 + $0x14] sm:$0xff]
        %v275 = vld [vmem:[#allocation5 + $0x1c] sm:$0xff]
        %v276 = vld [vmem:[#allocation5 + $0x24] sm:$0xf]
        %v277 = vld [vmem:[#allocation5 + $0x28] sm:$0xff]
        %v278 = vld [vmem:[#allocation5 + $0x30] sm:$0xff]
        %v279 = vld [vmem:[#allocation5 + $0x38] sm:$0xf]
        %v280 = vld [vmem:[#allocation5 + $0x3c] sm:$0xff]
        %v281 = vld [vmem:[#allocation5 + $0x44] sm:$0xff]
        %v282 = vld [vmem:[#allocation5 + $0x4c] sm:$0xf]
        %v283 = vld [vmem:[#allocation5 + $0x50] sm:$0xff]
        %v284 = vld [vmem:[#allocation5 + $0x58] sm:$0xff]
        %v285 = vld [vmem:[#allocation5 + $0x60] sm:$0xf]
        %v286 = vld [vmem:[#allocation5 + $0x64] sm:$0xff]
        %v287 = vld [vmem:[#allocation5 + $0x6c] sm:$0xff]
        %v288 = vld [vmem:[#allocation5 + $0x74] sm:$0xf]
        %v289 = vld [vmem:[#allocation5 + $0x78] sm:$0xff]
        %v290 = vld [vmem:[#allocation5 + $0x80] sm:$0xff]
        %v291 = vld [vmem:[#allocation5 + $0x88] sm:$0xf]
        %v292 = vld [vmem:[%s2] sm:$0x1f]
        %v294 = vlaneseq
        %v295 = vshrl.u32 %v294, 7
        %v296 = vsub.s32 0, %v295
        %v297 = vrot.slane %v292, %v296
        %v298 = vlaneseq
        %v299 = vshrl.u32 %v298, 7
        %v300 = vsub.s32 1, %v299
        %v301 = vrot.slane %v292, %v300
        %v302 = vlaneseq
        %v303 = vshrl.u32 %v302, 7
        %v304 = vsub.s32 2, %v303
        %v305 = vrot.slane %v292, %v304
        %v306 = vlaneseq
        %v307 = vshrl.u32 %v306, 7
        %v308 = vsub.s32 3, %v307
        %v309 = vrot.slane %v292, %v308
        %v310 = vlaneseq
        %v311 = vshrl.u32 %v310, 7
        %v312 = vsub.s32 4, %v311
        %v313 = vrot.slane %v292, %v312
        %v340 = vunpack.c.l.b16 %v271
        %v341 = vunpack.c.h.b16 %v271
        %v342 = vunpack.c.l.b16 %v272
        %v343 = vunpack.c.h.b16 %v272
        %v344 = vunpack.c.l.b16 %v273
        %v345 = vunpack.c.l.b16 %v274
        %v346 = vunpack.c.h.b16 %v274
        %v347 = vunpack.c.l.b16 %v275
        %v348 = vunpack.c.h.b16 %v275
        %v349 = vunpack.c.l.b16 %v276
        %v350 = vunpack.c.l.b16 %v277
        %v351 = vunpack.c.h.b16 %v277
        %v352 = vunpack.c.l.b16 %v278
        %v353 = vunpack.c.h.b16 %v278
        %v354 = vunpack.c.l.b16 %v279
        %v355 = vunpack.c.l.b16 %v280
        %v356 = vunpack.c.h.b16 %v280
        %v357 = vunpack.c.l.b16 %v281
        %v358 = vunpack.c.h.b16 %v281
        %v359 = vunpack.c.l.b16 %v282
        %v360 = vunpack.c.l.b16 %v283
        %v361 = vunpack.c.h.b16 %v283
        %v362 = vunpack.c.l.b16 %v284
        %v363 = vunpack.c.h.b16 %v284
        %v364 = vunpack.c.l.b16 %v285
        %v365 = vunpack.c.l.b16 %v286
        %v366 = vunpack.c.h.b16 %v286
        %v367 = vunpack.c.l.b16 %v287
        %v368 = vunpack.c.h.b16 %v287
        %v369 = vunpack.c.l.b16 %v288
        %v370 = vunpack.c.l.b16 %v289
        %v371 = vunpack.c.h.b16 %v289
        %v372 = vunpack.c.l.b16 %v290
        %v373 = vunpack.c.h.b16 %v290
        %v374 = vunpack.c.l.b16 %v291
        %v375 = vpack.c.b16 %v345, %v340
        %v376 = vpack.c.b16 %v346, %v341
        %v377 = vpack.c.b16 %v347, %v342
        %v378 = vpack.c.b16 %v348, %v343
        %v379 = vpack.c.b16 %v349, %v344
        %v380 = vpack.c.b16 %v355, %v350
        %v381 = vpack.c.b16 %v356, %v351
        %v382 = vpack.c.b16 %v357, %v352
        %v383 = vpack.c.b16 %v358, %v353
        %v384 = vpack.c.b16 %v359, %v354
        %v385 = vpack.c.b16 %v365, %v360
        %v386 = vpack.c.b16 %v366, %v361
        %v387 = vpack.c.b16 %v367, %v362
        %v388 = vpack.c.b16 %v368, %v363
        %v389 = vpack.c.b16 %v369, %v364
        %v390 = vpack.c.b16 %v370, %v370
        %v391 = vpack.c.b16 %v371, %v371
        %v392 = vpack.c.b16 %v372, %v372
        %v393 = vpack.c.b16 %v373, %v373
        %v394 = vpack.c.b16 %v374, %v374
        %vm410 = vcmask 457728
        %v412 = vsel %vm410, %v270, 0
        %vm414 = vcmask 1043456
        %v416 = vsel %vm414, %v390, 0
        %v419 = vsel %vm414, %v391, 0
        %v422 = vsel %vm414, %v392, 0
        %v425 = vsel %vm414, %v393, 0
        %v428 = vsel %vm414, %v394, 0
        %430 = vmatprep.subr.bf16.mxu0 %v376
        %431 = vmatpush1.bf16.msra.mxu0 %v375
        %432 = vmatprep.subr.bf16.mxu0 %v381
        %433 = vmatpush1.bf16.msra.mxu0 %v380
        %434 = vmatprep.subr.bf16.mxu0 %v386
        %435 = vmatpush1.bf16.msra.mxu0 %v385
        %436 = vmatprep.subr.bf16.mxu0 %v419
        %437 = vmatpush1.bf16.msra.mxu0 %v416
        %438 = vmatprep.subr.bf16.mxu0 0
        %439 = vmatpush1.bf16.msra.mxu0 0
        %440 = vmatprep.subr.bf16.mxu0 0
        %441 = vmatpush1.bf16.msra.mxu0 0
        %442 = vmatprep.subr.bf16.mxu0 0
        %443 = vmatpush1.bf16.msra.mxu0 0
        %444 = vmatprep.subr.bf16.mxu0 0
        %445 = vmatpush1.bf16.msra.mxu0 0
        %446 = vmatprep.subr.bf16.mxu0 0
        %447 = vmatpush1.bf16.msra.mxu0 0
        %448 = vmatprep.subr.bf16.mxu0 0
        %449 = vmatpush1.bf16.msra.mxu0 0
        %450 = vmatprep.subr.bf16.mxu0 0
        %451 = vmatpush1.bf16.msra.mxu0 0
        %452 = vmatprep.subr.bf16.mxu0 0
        %453 = vmatpush1.bf16.msra.mxu0 0
        %454 = vmatprep.subr.bf16.mxu0 0
        %455 = vmatpush1.bf16.msra.mxu0 0
        %456 = vmatprep.subr.bf16.mxu0 0
        %457 = vmatpush1.bf16.msra.mxu0 0
        %458 = vmatprep.subr.bf16.mxu0 0
        %459 = vmatpush1.bf16.msra.mxu0 0
        %460 = vmatprep.subr.bf16.mxu0 0
        %461 = vmatpush1.bf16.msra.mxu0 0
        %462 = vmatprep.mubr.bf16.mxu0 0
        %463 = vmatmul.mubr.bf16.gmra.mrb[0].mxu0 %v412
        %v464 = vpop.f32.mrb[0].mxu0
        %v465 = vadd.f32 %v297, %v464
        %v466 = vpop.f32.mrb[0].mxu0
        %v467 = vadd.f32 %v301, %v466
        %v468 = vpop.f32.mrb[0].mxu0
        %v469 = vpop.f32.mrb[0].mxu0
        %470 = vdwg.mxu0
        %471 = vmatprep.subr.bf16.mxu0 %v378
        %472 = vmatpush1.bf16.msra.mxu0 %v377
        %473 = vmatprep.subr.bf16.mxu0 %v383
        %474 = vmatpush1.bf16.msra.mxu0 %v382
        %475 = vmatprep.subr.bf16.mxu0 %v388
        %476 = vmatpush1.bf16.msra.mxu0 %v387
        %477 = vmatprep.subr.bf16.mxu0 %v425
        %478 = vmatpush1.bf16.msra.mxu0 %v422
        %479 = vmatprep.subr.bf16.mxu0 0
        %480 = vmatpush1.bf16.msra.mxu0 0
        %481 = vmatprep.subr.bf16.mxu0 0
        %482 = vmatpush1.bf16.msra.mxu0 0
        %483 = vmatprep.subr.bf16.mxu0 0
        %484 = vmatpush1.bf16.msra.mxu0 0
        %485 = vmatprep.subr.bf16.mxu0 0
        %486 = vmatpush1.bf16.msra.mxu0 0
        %487 = vmatprep.subr.bf16.mxu0 0
        %488 = vmatpush1.bf16.msra.mxu0 0
        %489 = vmatprep.subr.bf16.mxu0 0
        %490 = vmatpush1.bf16.msra.mxu0 0
        %491 = vmatprep.subr.bf16.mxu0 0
        %492 = vmatpush1.bf16.msra.mxu0 0
        %493 = vmatprep.subr.bf16.mxu0 0
        %494 = vmatpush1.bf16.msra.mxu0 0
        %495 = vmatprep.subr.bf16.mxu0 0
        %496 = vmatpush1.bf16.msra.mxu0 0
        %497 = vmatprep.subr.bf16.mxu0 0
        %498 = vmatpush1.bf16.msra.mxu0 0
        %499 = vmatprep.subr.bf16.mxu0 0
        %500 = vmatpush1.bf16.msra.mxu0 0
        %501 = vmatprep.subr.bf16.mxu0 0
        %502 = vmatpush1.bf16.msra.mxu0 0
        %503 = vmatprep.mubr.bf16.mxu0 0
        %504 = vmatmul.mubr.bf16.gmra.mrb[0].mxu0 %v412
        %v505 = vpop.f32.mrb[0].mxu0
        %v506 = vadd.f32 %v305, %v505
        %v507 = vpop.f32.mrb[0].mxu0
        %v508 = vadd.f32 %v309, %v507
        %v509 = vpop.f32.mrb[0].mxu0
        %v510 = vpop.f32.mrb[0].mxu0
        %511 = vdwg.mxu0
        %512 = vmatprep.subr.bf16.mxu0 0
        %513 = vmatpush1.bf16.msra.mxu0 %v379
        %514 = vmatprep.subr.bf16.mxu0 0
        %515 = vmatpush1.bf16.msra.mxu0 %v384
        %516 = vmatprep.subr.bf16.mxu0 0
        %517 = vmatpush1.bf16.msra.mxu0 %v389
        %518 = vmatprep.subr.bf16.mxu0 0
        %519 = vmatpush1.bf16.msra.mxu0 %v428
        %520 = vmatprep.subr.bf16.mxu0 0
        %521 = vmatpush1.bf16.msra.mxu0 0
        %522 = vmatprep.subr.bf16.mxu0 0
        %523 = vmatpush1.bf16.msra.mxu0 0
        %524 = vmatprep.subr.bf16.mxu0 0
        %525 = vmatpush1.bf16.msra.mxu0 0
        %526 = vmatprep.subr.bf16.mxu0 0
        %527 = vmatpush1.bf16.msra.mxu0 0
        %528 = vmatprep.subr.bf16.mxu0 0
        %529 = vmatpush1.bf16.msra.mxu0 0
        %530 = vmatprep.subr.bf16.mxu0 0
        %531 = vmatpush1.bf16.msra.mxu0 0
        %532 = vmatprep.subr.bf16.mxu0 0
        %533 = vmatpush1.bf16.msra.mxu0 0
        %534 = vmatprep.subr.bf16.mxu0 0
        %535 = vmatpush1.bf16.msra.mxu0 0
        %536 = vmatprep.subr.bf16.mxu0 0
        %537 = vmatpush1.bf16.msra.mxu0 0
        %538 = vmatprep.subr.bf16.mxu0 0
        %539 = vmatpush1.bf16.msra.mxu0 0
        %540 = vmatprep.subr.bf16.mxu0 0
        %541 = vmatpush1.bf16.msra.mxu0 0
        %542 = vmatprep.subr.bf16.mxu0 0
        %543 = vmatpush1.bf16.msra.mxu0 0
        %544 = vmatprep.mubr.bf16.mxu0 0
        %545 = vmatmul.mubr.bf16.gmra.mrb[0].mxu0 %v412
        %v546 = vpop.f32.mrb[0].mxu0
        %v547 = vadd.f32 %v313, %v546
        %v548 = vpop.f32.mrb[0].mxu0
        %v549 = vpop.f32.mrb[0].mxu0
        %v550 = vpop.f32.mrb[0].mxu0
        %551 = vdwg.mxu0
        %v552 = vmax.f32 %v465, 0.0
        %v553 = vmax.f32 %v467, 0.0
        %v554 = vmax.f32 %v506, 0.0
        %v555 = vmax.f32 %v508, 0.0
        %v556 = vmax.f32 %v547, 0.0
        %v557 = vpack.c.bf16 %v552, %v552
        %v558 = vpack.c.bf16 %v553, %v553
        %v559 = vpack.c.bf16 %v554, %v554
        %v560 = vpack.c.bf16 %v555, %v555
        %v561 = vpack.c.bf16 %v556, %v556
        %v562 = vld [vmem:[#allocation7] sm:$0xff]
        %v563 = vld [vmem:[#allocation7 + $0x8] sm:$0xff]
        %v564 = vld [vmem:[#allocation7 + $0x10] sm:$0xff]
        %v565 = vld [vmem:[#allocation7 + $0x18] sm:$0xff]
        %v566 = vld [vmem:[#allocation7 + $0x20] sm:$0xff]
        %v567 = vld [vmem:[#allocation7 + $0x28] sm:$0xff]
        %v568 = vld [vmem:[#allocation7 + $0x30] sm:$0xff]
        %v569 = vld [vmem:[#allocation7 + $0x38] sm:$0xff]
        %v570 = vld [vmem:[#allocation7 + $0x40] sm:$0xff]
        %v571 = vld [vmem:[#allocation7 + $0x48] sm:$0xff]
        %v572 = vld [vmem:[#allocation7 + $0x50] sm:$0xff]
        %v573 = vld [vmem:[#allocation7 + $0x58] sm:$0xff]
        %v574 = vld [vmem:[#allocation7 + $0x60] sm:$0xff]
        %v575 = vld [vmem:[#allocation7 + $0x68] sm:$0xff]
        %v576 = vld [vmem:[#allocation7 + $0x70] sm:$0xff]
        %v577 = vld [vmem:[#allocation7 + $0x78] sm:$0xff]
        %v578 = vld [vmem:[#allocation7 + $0x80] sm:$0xff]
        %v579 = vld [vmem:[#allocation7 + $0x88] sm:$0xff]
        %v580 = vld [vmem:[#allocation7 + $0x90] sm:$0xff]
        %v581 = vld [vmem:[#allocation7 + $0x98] sm:$0xff]
        %v582 = vld [vmem:[#allocation7 + $0xa0] sm:$0xff]
        %v583 = vld [vmem:[#allocation7 + $0xa8] sm:$0xff]
        %v584 = vld [vmem:[#allocation7 + $0xb0] sm:$0xff]
        %v585 = vld [vmem:[#allocation7 + $0xb8] sm:$0xff]
        %v586 = vld [vmem:[#allocation7 + $0xc0] sm:$0xff]
        %v587 = vld [vmem:[#allocation7 + $0xc8] sm:$0xff]
        %v588 = vld [vmem:[#allocation7 + $0xd0] sm:$0xff]
        %v589 = vld [vmem:[#allocation7 + $0xd8] sm:$0xff]
        %v590 = vld [vmem:[#allocation7 + $0xe0] sm:$0xff]
        %v591 = vld [vmem:[#allocation7 + $0xe8] sm:$0xff]
        %v592 = vld [vmem:[#allocation7 + $0xf0] sm:$0xff]
        %v593 = vld [vmem:[#allocation7 + $0xf8] sm:$0xff]
        %v594 = vld [vmem:[#allocation7 + $0x100] sm:$0xff]
        %v595 = vld [vmem:[#allocation7 + $0x108] sm:$0xff]
        %v596 = vld [vmem:[#allocation7 + $0x110] sm:$0xff]
        %v597 = vld [vmem:[#allocation7 + $0x118] sm:$0xff]
        %v598 = vld [vmem:[#allocation7 + $0x120] sm:$0xff]
        %v599 = vld [vmem:[#allocation7 + $0x128] sm:$0xff]
        %v600 = vld [vmem:[#allocation7 + $0x130] sm:$0xff]
        %v601 = vld [vmem:[#allocation7 + $0x138] sm:$0xff]
        %v602 = vld [vmem:[#allocation7 + $0x140] sm:$0xff]
        %v603 = vld [vmem:[#allocation7 + $0x148] sm:$0xff]
        %v604 = vld [vmem:[#allocation7 + $0x150] sm:$0xff]
        %v605 = vld [vmem:[#allocation7 + $0x158] sm:$0xff]
        %v606 = vld [vmem:[#allocation7 + $0x160] sm:$0xff]
        %v607 = vld [vmem:[#allocation7 + $0x168] sm:$0xff]
        %v608 = vld [vmem:[#allocation7 + $0x170] sm:$0xff]
        %v609 = vld [vmem:[#allocation7 + $0x178] sm:$0xff]
        %v610 = vld [vmem:[#allocation7 + $0x180] sm:$0xff]
        %v611 = vld [vmem:[#allocation7 + $0x188] sm:$0xff]
        %v612 = vld [vmem:[#allocation7 + $0x190] sm:$0xff]
        %v613 = vld [vmem:[#allocation7 + $0x198] sm:$0xff]
        %v614 = vld [vmem:[#allocation7 + $0x1a0] sm:$0xff]
        %v615 = vld [vmem:[#allocation7 + $0x1a8] sm:$0xff]
        %v616 = vld [vmem:[#allocation7 + $0x1b0] sm:$0xff]
        %v617 = vld [vmem:[#allocation7 + $0x1b8] sm:$0xff]
        %v618 = vld [vmem:[#allocation7 + $0x1c0] sm:$0xff]
        %v619 = vld [vmem:[#allocation7 + $0x1c8] sm:$0xff]
        %v620 = vld [vmem:[#allocation7 + $0x1d0] sm:$0xff]
        %v621 = vld [vmem:[#allocation7 + $0x1d8] sm:$0xff]
        %v622 = vld [vmem:[#allocation7 + $0x1e0] sm:$0xff]
        %v623 = vld [vmem:[#allocation7 + $0x1e8] sm:$0xff]
        %v624 = vld [vmem:[#allocation7 + $0x1f0] sm:$0xff]
        %v625 = vld [vmem:[#allocation7 + $0x1f8] sm:$0xff]
        %v626 = vld [vmem:[#allocation7 + $0x200] sm:$0xff]
        %v627 = vld [vmem:[#allocation7 + $0x208] sm:$0xff]
        %v628 = vld [vmem:[#allocation7 + $0x210] sm:$0xff]
        %v629 = vld [vmem:[#allocation7 + $0x218] sm:$0xff]
        %v630 = vld [vmem:[#allocation7 + $0x220] sm:$0xff]
        %v631 = vld [vmem:[#allocation7 + $0x228] sm:$0xff]
        %v632 = vld [vmem:[#allocation7 + $0x230] sm:$0xff]
        %v633 = vld [vmem:[#allocation7 + $0x238] sm:$0xff]
        %v634 = vld [vmem:[#allocation7 + $0x240] sm:$0xff]
        %v635 = vld [vmem:[#allocation7 + $0x248] sm:$0xff]
        %v636 = vld [vmem:[#allocation7 + $0x250] sm:$0xff]
        %v637 = vld [vmem:[#allocation7 + $0x258] sm:$0xff]
        %v638 = vld [vmem:[#allocation7 + $0x260] sm:$0xff]
        %v639 = vld [vmem:[#allocation7 + $0x268] sm:$0xff]
        %v640 = vld [vmem:[#allocation7 + $0x270] sm:$0xff]
        %v641 = vld [vmem:[#allocation7 + $0x278] sm:$0xff]
        %v642 = vld [vmem:[%s4] sm:$0x3]
        %v644 = vlaneseq
        %v645 = vshrl.u32 %v644, 7
        %v646 = vsub.s32 0, %v645
        %v647 = vrot.slane %v642, %v646
        %v648 = vlaneseq
        %v649 = vshrl.u32 %v648, 7
        %v650 = vsub.s32 1, %v649
        %v651 = vrot.slane %v642, %v650
        %v734 = vunpack.c.l.b16 %v562
        %v735 = vunpack.c.h.b16 %v562
        %v736 = vunpack.c.l.b16 %v563
        %v737 = vunpack.c.h.b16 %v563
        %v738 = vunpack.c.l.b16 %v564
        %v739 = vunpack.c.h.b16 %v564
        %v740 = vunpack.c.l.b16 %v565
        %v741 = vunpack.c.h.b16 %v565
        %v742 = vunpack.c.l.b16 %v566
        %v743 = vunpack.c.h.b16 %v566
        %v744 = vunpack.c.l.b16 %v567
        %v745 = vunpack.c.h.b16 %v567
        %v746 = vunpack.c.l.b16 %v568
        %v747 = vunpack.c.h.b16 %v568
        %v748 = vunpack.c.l.b16 %v569
        %v749 = vunpack.c.h.b16 %v569
        %v750 = vunpack.c.l.b16 %v570
        %v751 = vunpack.c.h.b16 %v570
        %v752 = vunpack.c.l.b16 %v571
        %v753 = vunpack.c.h.b16 %v571
        %v754 = vunpack.c.l.b16 %v572
        %v755 = vunpack.c.h.b16 %v572
        %v756 = vunpack.c.l.b16 %v573
        %v757 = vunpack.c.h.b16 %v573
        %v758 = vunpack.c.l.b16 %v574
        %v759 = vunpack.c.h.b16 %v574
        %v760 = vunpack.c.l.b16 %v575
        %v761 = vunpack.c.h.b16 %v575
        %v762 = vunpack.c.l.b16 %v576
        %v763 = vunpack.c.h.b16 %v576
        %v764 = vunpack.c.l.b16 %v577
        %v765 = vunpack.c.h.b16 %v577
        %v766 = vunpack.c.l.b16 %v578
        %v767 = vunpack.c.h.b16 %v578
        %v768 = vunpack.c.l.b16 %v579
        %v769 = vunpack.c.h.b16 %v579
        %v770 = vunpack.c.l.b16 %v580
        %v771 = vunpack.c.h.b16 %v580
        %v772 = vunpack.c.l.b16 %v581
        %v773 = vunpack.c.h.b16 %v581
        %v774 = vunpack.c.l.b16 %v582
        %v775 = vunpack.c.h.b16 %v582
        %v776 = vunpack.c.l.b16 %v583
        %v777 = vunpack.c.h.b16 %v583
        %v778 = vunpack.c.l.b16 %v584
        %v779 = vunpack.c.h.b16 %v584
        %v780 = vunpack.c.l.b16 %v585
        %v781 = vunpack.c.h.b16 %v585
        %v782 = vunpack.c.l.b16 %v586
        %v783 = vunpack.c.h.b16 %v586
        %v784 = vunpack.c.l.b16 %v587
        %v785 = vunpack.c.h.b16 %v587
        %v786 = vunpack.c.l.b16 %v588
        %v787 = vunpack.c.h.b16 %v588
        %v788 = vunpack.c.l.b16 %v589
        %v789 = vunpack.c.h.b16 %v589
        %v790 = vunpack.c.l.b16 %v590
        %v791 = vunpack.c.h.b16 %v590
        %v792 = vunpack.c.l.b16 %v591
        %v793 = vunpack.c.h.b16 %v591
        %v794 = vunpack.c.l.b16 %v592
        %v795 = vunpack.c.h.b16 %v592
        %v796 = vunpack.c.l.b16 %v593
        %v797 = vunpack.c.h.b16 %v593
        %v798 = vunpack.c.l.b16 %v594
        %v799 = vunpack.c.h.b16 %v594
        %v800 = vunpack.c.l.b16 %v595
        %v801 = vunpack.c.h.b16 %v595
        %v802 = vunpack.c.l.b16 %v596
        %v803 = vunpack.c.h.b16 %v596
        %v804 = vunpack.c.l.b16 %v597
        %v805 = vunpack.c.h.b16 %v597
        %v806 = vunpack.c.l.b16 %v598
        %v807 = vunpack.c.h.b16 %v598
        %v808 = vunpack.c.l.b16 %v599
        %v809 = vunpack.c.h.b16 %v599
        %v810 = vunpack.c.l.b16 %v600
        %v811 = vunpack.c.h.b16 %v600
        %v812 = vunpack.c.l.b16 %v601
        %v813 = vunpack.c.h.b16 %v601
        %v814 = vunpack.c.l.b16 %v602
        %v815 = vunpack.c.h.b16 %v602
        %v816 = vunpack.c.l.b16 %v603
        %v817 = vunpack.c.h.b16 %v603
        %v818 = vunpack.c.l.b16 %v604
        %v819 = vunpack.c.h.b16 %v604
        %v820 = vunpack.c.l.b16 %v605
        %v821 = vunpack.c.h.b16 %v605
        %v822 = vunpack.c.l.b16 %v606
        %v823 = vunpack.c.h.b16 %v606
        %v824 = vunpack.c.l.b16 %v607
        %v825 = vunpack.c.h.b16 %v607
        %v826 = vunpack.c.l.b16 %v608
        %v827 = vunpack.c.h.b16 %v608
        %v828 = vunpack.c.l.b16 %v609
        %v829 = vunpack.c.h.b16 %v609
        %v830 = vunpack.c.l.b16 %v610
        %v831 = vunpack.c.h.b16 %v610
        %v832 = vunpack.c.l.b16 %v611
        %v833 = vunpack.c.h.b16 %v611
        %v834 = vunpack.c.l.b16 %v612
        %v835 = vunpack.c.h.b16 %v612
        %v836 = vunpack.c.l.b16 %v613
        %v837 = vunpack.c.h.b16 %v613
        %v838 = vunpack.c.l.b16 %v614
        %v839 = vunpack.c.h.b16 %v614
        %v840 = vunpack.c.l.b16 %v615
        %v841 = vunpack.c.h.b16 %v615
        %v842 = vunpack.c.l.b16 %v616
        %v843 = vunpack.c.h.b16 %v616
        %v844 = vunpack.c.l.b16 %v617
        %v845 = vunpack.c.h.b16 %v617
        %v846 = vunpack.c.l.b16 %v618
        %v847 = vunpack.c.h.b16 %v618
        %v848 = vunpack.c.l.b16 %v619
        %v849 = vunpack.c.h.b16 %v619
        %v850 = vunpack.c.l.b16 %v620
        %v851 = vunpack.c.h.b16 %v620
        %v852 = vunpack.c.l.b16 %v621
        %v853 = vunpack.c.h.b16 %v621
        %v854 = vunpack.c.l.b16 %v622
        %v855 = vunpack.c.h.b16 %v622
        %v856 = vunpack.c.l.b16 %v623
        %v857 = vunpack.c.h.b16 %v623
        %v858 = vunpack.c.l.b16 %v624
        %v859 = vunpack.c.h.b16 %v624
        %v860 = vunpack.c.l.b16 %v625
        %v861 = vunpack.c.h.b16 %v625
        %v862 = vunpack.c.l.b16 %v626
        %v863 = vunpack.c.h.b16 %v626
        %v864 = vunpack.c.l.b16 %v627
        %v865 = vunpack.c.h.b16 %v627
        %v866 = vunpack.c.l.b16 %v628
        %v867 = vunpack.c.h.b16 %v628
        %v868 = vunpack.c.l.b16 %v629
        %v869 = vunpack.c.h.b16 %v629
        %v870 = vunpack.c.l.b16 %v630
        %v871 = vunpack.c.h.b16 %v630
        %v872 = vunpack.c.l.b16 %v631
        %v873 = vunpack.c.h.b16 %v631
        %v874 = vunpack.c.l.b16 %v632
        %v875 = vunpack.c.h.b16 %v632
        %v876 = vunpack.c.l.b16 %v633
        %v877 = vunpack.c.h.b16 %v633
        %v878 = vunpack.c.l.b16 %v634
        %v879 = vunpack.c.h.b16 %v634
        %v880 = vunpack.c.l.b16 %v635
        %v881 = vunpack.c.h.b16 %v635
        %v882 = vunpack.c.l.b16 %v636
        %v883 = vunpack.c.h.b16 %v636
        %v884 = vunpack.c.l.b16 %v637
        %v885 = vunpack.c.h.b16 %v637
        %v886 = vunpack.c.l.b16 %v638
        %v887 = vunpack.c.h.b16 %v638
        %v888 = vunpack.c.l.b16 %v639
        %v889 = vunpack.c.h.b16 %v639
        %v890 = vunpack.c.l.b16 %v640
        %v891 = vunpack.c.h.b16 %v640
        %v892 = vunpack.c.l.b16 %v641
        %v893 = vunpack.c.h.b16 %v641
        %v894 = vpack.c.b16 %v736, %v734
        %v895 = vpack.c.b16 %v737, %v735
        %v896 = vpack.c.b16 %v740, %v738
        %v897 = vpack.c.b16 %v741, %v739
        %v898 = vpack.c.b16 %v744, %v742
        %v899 = vpack.c.b16 %v745, %v743
        %v900 = vpack.c.b16 %v748, %v746
        %v901 = vpack.c.b16 %v749, %v747
        %v902 = vpack.c.b16 %v752, %v750
        %v903 = vpack.c.b16 %v753, %v751
        %v904 = vpack.c.b16 %v756, %v754
        %v905 = vpack.c.b16 %v757, %v755
        %v906 = vpack.c.b16 %v760, %v758
        %v907 = vpack.c.b16 %v761, %v759
        %v908 = vpack.c.b16 %v764, %v762
        %v909 = vpack.c.b16 %v765, %v763
        %v910 = vpack.c.b16 %v768, %v766
        %v911 = vpack.c.b16 %v769, %v767
        %v912 = vpack.c.b16 %v772, %v770
        %v913 = vpack.c.b16 %v773, %v771
        %v914 = vpack.c.b16 %v776, %v774
        %v915 = vpack.c.b16 %v777, %v775
        %v916 = vpack.c.b16 %v780, %v778
        %v917 = vpack.c.b16 %v781, %v779
        %v918 = vpack.c.b16 %v784, %v782
        %v919 = vpack.c.b16 %v785, %v783
        %v920 = vpack.c.b16 %v788, %v786
        %v921 = vpack.c.b16 %v789, %v787
        %v922 = vpack.c.b16 %v792, %v790
        %v923 = vpack.c.b16 %v793, %v791
        %v924 = vpack.c.b16 %v796, %v794
        %v925 = vpack.c.b16 %v797, %v795
        %v926 = vpack.c.b16 %v800, %v798
        %v927 = vpack.c.b16 %v801, %v799
        %v928 = vpack.c.b16 %v804, %v802
        %v929 = vpack.c.b16 %v805, %v803
        %v930 = vpack.c.b16 %v808, %v806
        %v931 = vpack.c.b16 %v809, %v807
        %v932 = vpack.c.b16 %v812, %v810
        %v933 = vpack.c.b16 %v813, %v811
        %v934 = vpack.c.b16 %v816, %v814
        %v935 = vpack.c.b16 %v817, %v815
        %v936 = vpack.c.b16 %v820, %v818
        %v937 = vpack.c.b16 %v821, %v819
        %v938 = vpack.c.b16 %v824, %v822
        %v939 = vpack.c.b16 %v825, %v823
        %v940 = vpack.c.b16 %v828, %v826
        %v941 = vpack.c.b16 %v829, %v827
        %v942 = vpack.c.b16 %v832, %v830
        %v943 = vpack.c.b16 %v833, %v831
        %v944 = vpack.c.b16 %v836, %v834
        %v945 = vpack.c.b16 %v837, %v835
        %v946 = vpack.c.b16 %v840, %v838
        %v947 = vpack.c.b16 %v841, %v839
        %v948 = vpack.c.b16 %v844, %v842
        %v949 = vpack.c.b16 %v845, %v843
        %v950 = vpack.c.b16 %v848, %v846
        %v951 = vpack.c.b16 %v849, %v847
        %v952 = vpack.c.b16 %v852, %v850
        %v953 = vpack.c.b16 %v853, %v851
        %v954 = vpack.c.b16 %v856, %v854
        %v955 = vpack.c.b16 %v857, %v855
        %v956 = vpack.c.b16 %v860, %v858
        %v957 = vpack.c.b16 %v861, %v859
        %v958 = vpack.c.b16 %v864, %v862
        %v959 = vpack.c.b16 %v865, %v863
        %v960 = vpack.c.b16 %v868, %v866
        %v961 = vpack.c.b16 %v869, %v867
        %v962 = vpack.c.b16 %v872, %v870
        %v963 = vpack.c.b16 %v873, %v871
        %v964 = vpack.c.b16 %v876, %v874
        %v965 = vpack.c.b16 %v877, %v875
        %v966 = vpack.c.b16 %v880, %v878
        %v967 = vpack.c.b16 %v881, %v879
        %v968 = vpack.c.b16 %v884, %v882
        %v969 = vpack.c.b16 %v885, %v883
        %v970 = vpack.c.b16 %v888, %v886
        %v971 = vpack.c.b16 %v889, %v887
        %v972 = vpack.c.b16 %v892, %v890
        %v973 = vpack.c.b16 %v893, %v891
        %1054 = vmatprep.subr.bf16.mxu0 %v895
        %1055 = vmatpush1.bf16.msra.mxu0 %v894
        %1056 = vmatprep.subr.bf16.mxu0 %v897
        %1057 = vmatpush1.bf16.msra.mxu0 %v896
        %1058 = vmatprep.subr.bf16.mxu0 %v899
        %1059 = vmatpush1.bf16.msra.mxu0 %v898
        %1060 = vmatprep.subr.bf16.mxu0 %v901
        %1061 = vmatpush1.bf16.msra.mxu0 %v900
        %1062 = vmatprep.subr.bf16.mxu0 %v903
        %1063 = vmatpush1.bf16.msra.mxu0 %v902
        %1064 = vmatprep.subr.bf16.mxu0 %v905
        %1065 = vmatpush1.bf16.msra.mxu0 %v904
        %1066 = vmatprep.subr.bf16.mxu0 %v907
        %1067 = vmatpush1.bf16.msra.mxu0 %v906
        %1068 = vmatprep.subr.bf16.mxu0 %v909
        %1069 = vmatpush1.bf16.msra.mxu0 %v908
        %1070 = vmatprep.subr.bf16.mxu0 %v911
        %1071 = vmatpush1.bf16.msra.mxu0 %v910
        %1072 = vmatprep.subr.bf16.mxu0 %v913
        %1073 = vmatpush1.bf16.msra.mxu0 %v912
        %1074 = vmatprep.subr.bf16.mxu0 %v915
        %1075 = vmatpush1.bf16.msra.mxu0 %v914
        %1076 = vmatprep.subr.bf16.mxu0 %v917
        %1077 = vmatpush1.bf16.msra.mxu0 %v916
        %1078 = vmatprep.subr.bf16.mxu0 %v919
        %1079 = vmatpush1.bf16.msra.mxu0 %v918
        %1080 = vmatprep.subr.bf16.mxu0 %v921
        %1081 = vmatpush1.bf16.msra.mxu0 %v920
        %1082 = vmatprep.subr.bf16.mxu0 %v923
        %1083 = vmatpush1.bf16.msra.mxu0 %v922
        %1084 = vmatprep.subr.bf16.mxu0 %v925
        %1085 = vmatpush1.bf16.msra.mxu0 %v924
        %1086 = vmatprep.mubr.bf16.mxu0 %v558
        %1087 = vmatmul.mubr.bf16.gmra.mrb[0].mxu0 %v557
        %v1088 = vpop.f32.mrb[0].mxu0
        %v1089 = vadd.f32 %v647, %v1088
        %v1090 = vpop.f32.mrb[0].mxu0
        %v1091 = vadd.f32 %v651, %v1090
        %v1092 = vpop.f32.mrb[0].mxu0
        %v1093 = vpop.f32.mrb[0].mxu0
        %1094 = vdwg.mxu0
        %1095 = vmatprep.subr.bf16.mxu0 %v927
        %1096 = vmatpush1.bf16.msra.mxu0 %v926
        %1097 = vmatprep.subr.bf16.mxu0 %v929
        %1098 = vmatpush1.bf16.msra.mxu0 %v928
        %1099 = vmatprep.subr.bf16.mxu0 %v931
        %1100 = vmatpush1.bf16.msra.mxu0 %v930
        %1101 = vmatprep.subr.bf16.mxu0 %v933
        %1102 = vmatpush1.bf16.msra.mxu0 %v932
        %1103 = vmatprep.subr.bf16.mxu0 %v935
        %1104 = vmatpush1.bf16.msra.mxu0 %v934
        %1105 = vmatprep.subr.bf16.mxu0 %v937
        %1106 = vmatpush1.bf16.msra.mxu0 %v936
        %1107 = vmatprep.subr.bf16.mxu0 %v939
        %1108 = vmatpush1.bf16.msra.mxu0 %v938
        %1109 = vmatprep.subr.bf16.mxu0 %v941
        %1110 = vmatpush1.bf16.msra.mxu0 %v940
        %1111 = vmatprep.subr.bf16.mxu0 %v943
        %1112 = vmatpush1.bf16.msra.mxu0 %v942
        %1113 = vmatprep.subr.bf16.mxu0 %v945
        %1114 = vmatpush1.bf16.msra.mxu0 %v944
        %1115 = vmatprep.subr.bf16.mxu0 %v947
        %1116 = vmatpush1.bf16.msra.mxu0 %v946
        %1117 = vmatprep.subr.bf16.mxu0 %v949
        %1118 = vmatpush1.bf16.msra.mxu0 %v948
        %1119 = vmatprep.subr.bf16.mxu0 %v951
        %1120 = vmatpush1.bf16.msra.mxu0 %v950
        %1121 = vmatprep.subr.bf16.mxu0 %v953
        %1122 = vmatpush1.bf16.msra.mxu0 %v952
        %1123 = vmatprep.subr.bf16.mxu0 %v955
        %1124 = vmatpush1.bf16.msra.mxu0 %v954
        %1125 = vmatprep.subr.bf16.mxu0 %v957
        %1126 = vmatpush1.bf16.msra.mxu0 %v956
        %1127 = vmatprep.mubr.bf16.mxu0 %v560
        %1128 = vmatmul.mubr.bf16.gmra.mrb[0].mxu0 %v559
        %v1129 = vpop.f32.mrb[0].mxu0
        %v1130 = vadd.f32 %v1089, %v1129
        %v1131 = vpop.f32.mrb[0].mxu0
        %v1132 = vadd.f32 %v1091, %v1131
        %v1133 = vpop.f32.mrb[0].mxu0
        %v1134 = vpop.f32.mrb[0].mxu0
        %1135 = vdwg.mxu0
        %1136 = vmatprep.subr.bf16.mxu0 %v959
        %1137 = vmatpush1.bf16.msra.mxu0 %v958
        %1138 = vmatprep.subr.bf16.mxu0 %v961
        %1139 = vmatpush1.bf16.msra.mxu0 %v960
        %1140 = vmatprep.subr.bf16.mxu0 %v963
        %1141 = vmatpush1.bf16.msra.mxu0 %v962
        %1142 = vmatprep.subr.bf16.mxu0 %v965
        %1143 = vmatpush1.bf16.msra.mxu0 %v964
        %1144 = vmatprep.subr.bf16.mxu0 %v967
        %1145 = vmatpush1.bf16.msra.mxu0 %v966
        %1146 = vmatprep.subr.bf16.mxu0 %v969
        %1147 = vmatpush1.bf16.msra.mxu0 %v968
        %1148 = vmatprep.subr.bf16.mxu0 %v971
        %1149 = vmatpush1.bf16.msra.mxu0 %v970
        %1150 = vmatprep.subr.bf16.mxu0 %v973
        %1151 = vmatpush1.bf16.msra.mxu0 %v972
        %1152 = vmatprep.subr.bf16.mxu0 0
        %1153 = vmatpush1.bf16.msra.mxu0 0
        %1154 = vmatprep.subr.bf16.mxu0 0
        %1155 = vmatpush1.bf16.msra.mxu0 0
        %1156 = vmatprep.subr.bf16.mxu0 0
        %1157 = vmatpush1.bf16.msra.mxu0 0
        %1158 = vmatprep.subr.bf16.mxu0 0
        %1159 = vmatpush1.bf16.msra.mxu0 0
        %1160 = vmatprep.subr.bf16.mxu0 0
        %1161 = vmatpush1.bf16.msra.mxu0 0
        %1162 = vmatprep.subr.bf16.mxu0 0
        %1163 = vmatpush1.bf16.msra.mxu0 0
        %1164 = vmatprep.subr.bf16.mxu0 0
        %1165 = vmatpush1.bf16.msra.mxu0 0
        %1166 = vmatprep.subr.bf16.mxu0 0
        %1167 = vmatpush1.bf16.msra.mxu0 0
        %1168 = vmatprep.mubr.bf16.mxu0 0
        %1169 = vmatmul.mubr.bf16.gmra.mrb[0].mxu0 %v561
        %v1170 = vpop.f32.mrb[0].mxu0
        %v1171 = vadd.f32 %v1130, %v1170
        %v1172 = vpop.f32.mrb[0].mxu0
        %v1173 = vadd.f32 %v1132, %v1172
        %v1174 = vpop.f32.mrb[0].mxu0
        %v1175 = vpop.f32.mrb[0].mxu0
        %1176 = vdwg.mxu0
        %v1177 = vmax.f32 %v1171, 0.0
        %v1178 = vmax.f32 %v1173, 0.0
        %1179 = vst [vmem:[%s268] sm:$0xff] %v1177
        %1180 = vst [vmem:[%s268 + $0x8] sm:$0xff] %v1178
        %s1181 = sand.u32 %s141, 1
        %s1182 = scalar_lea.sflag [#allocation4], %s1181
        %s1183 = sand.u32 %s141, 1
        %s1184 = smul.addr %s1183, 16
        %s1185 = scalar_lea.vmem [#allocation8], %s1184
        // Predicated region
        $region53: #{tpu_custom_call.1} parent=39 // pred_check
          %p1186 = pneg %p151
        $region54: #{tpu_custom_call.1} parent=39 // pred_check_branch
          %1188 = sbr.rel (%p1186) target = $region56
        $region55: #{tpu_custom_call.1} parent=39 // pred_region
          %s1190 = ssub.s32 256, 256
          %1191 = vsyncadd %s1182, %s1190
          %s1192 = smul.addr %s23, 2
          %s1193 = smul.addr %s1192, 128
          %s1194 = scalar_lea.hbm %s5, %s1193
          %s1196 = sshll.u32 %s1185, 4
          %s1197 = int_to_ptr.vmem [resolvable:$true] %s1196
          %1199 = dma.vmem_to_hbm [thread:$0]  %s1197, 256, %s1194, %s1182
        $region56: #{tpu_custom_call.1} parent=39 // pred_fallthru
          _
      $region40: #{tpu_custom_call.1} parent=5 // pred_fallthru
        _
      %p1200 = scmp.le.s32.totalorder 2, %s18
      // Predicated region
      $region57: #{tpu_custom_call.1} parent=5 // pred_check
        %p1201 = pneg %p1200
      $region58: #{tpu_custom_call.1} parent=5 // pred_check_branch
        %1203 = sbr.rel (%p1201) target = $region60
      $region59: #{tpu_custom_call.1} parent=5 // pred_region
        %s1204 = ssub.s32 %s18, 2
        // Predicated region
        $region61: #{tpu_custom_call.1} parent=59 // pred_check
          %p1205 = pneg %p157
        $region62: #{tpu_custom_call.1} parent=59 // pred_check_branch
          %1207 = sbr.rel (%p1205) target = $region64
        $region63: #{tpu_custom_call.1} parent=59 // pred_region
          %s1208 = sand.u32 %s142, 1
          %s1209 = scalar_lea.sflag [#allocation4], %s1208
          %s1210 = sand.u32 %s142, 1
          %s1211 = smul.addr %s1210, 16
          %s1212 = scalar_lea.vmem [#allocation8], %s1211
          %1213 = dma.done %s1209, 256
        $region64: #{tpu_custom_call.1} parent=59 // pred_fallthru
          _
      $region60: #{tpu_custom_call.1} parent=5 // pred_fallthru
        _
    $region6: #{tpu_custom_call.1} parent=1 // loop_footer
      %s22 = sadd.s32 1, %s18
    $region7: #{tpu_custom_call.1} parent=1 // loop_footer_branch
      %17 = sbr.rel target = $region3
    $region8: #{tpu_custom_call.1} parent=1 // loop_exit
      _
    %1214 = vsyncpa [#allocation3], 1
    %s1215 = scalar_lea.sflag [#allocation3], 1
    %1216 = vsyncpa %s1215, 1
    %1217 = vsyncpa [#allocation6], 1
    %1218 = vsyncpa [#allocation4], 1
    %s1219 = scalar_lea.sflag [#allocation4], 1
    %1220 = vsyncpa %s1219, 1

</llo_original>
